<compile_context>
chip_gen: v5e
topology: v5e:2x2
jax: 0.10.0
libtpu: 0.0.40
codegen_flags: <defaults>
</compile_context>

<pallas_src>
import functools
import math

import jax
import jax.numpy as jnp
from jax import lax
from jax.experimental import pallas as pl
from jax.experimental.pallas import tpu as pltpu


def _scalar_mix_kernel(coeff_ref, x_ref, o_ref, *, row_chunk):
    # coeff_ref: SMEM (L,) f32  -- gamma * softmax(scalar_parameters)
    # x_ref:     VMEM (L, tile_rows, W) tile of the stacked layers (native dtype)
    # o_ref:     VMEM (tile_rows, W) output tile (native dtype)
    L, tile_rows, _ = x_ref.shape

    def mix_rows(r0, n_rows):
        acc = coeff_ref[0] * x_ref[0, pl.ds(r0, n_rows), :].astype(jnp.float32)
        for k in range(1, L):  # L is small & static -> unrolled
            acc = acc + coeff_ref[k] * x_ref[k, pl.ds(r0, n_rows), :].astype(jnp.float32)
        o_ref[pl.ds(r0, n_rows), :] = acc.astype(o_ref.dtype)

    if tile_rows <= row_chunk:
        mix_rows(0, tile_rows)
    else:
        # Wrapper guarantees tile_rows % row_chunk == 0.  Chunking with a real
        # loop boundary bounds the f32 temporaries to ~3*row_chunk*W*4 bytes
        # regardless of the pipeline tile size.
        def body(c, carry):
            mix_rows(pl.multiple_of(c * row_chunk, row_chunk), row_chunk)
            return carry

        lax.fori_loop(0, tile_rows // row_chunk, body, 0, unroll=False)


def scalar_mix_forward(scalar_parameters, gamma, input_tensor, *,
                       row_chunk=256,
                       vmem_budget_bytes=20 * 1024 * 1024):
    """gamma * sum_k softmax(scalar_parameters)[k] * input_tensor[k] (eval mode)."""
    L = input_tensor.shape[0]
    assert scalar_parameters.shape == (L,)
    rest_shape = input_tensor.shape[1:]
    dtype = input_tensor.dtype
    itemsize = jnp.dtype(dtype).itemsize
    total = int(math.prod(rest_shape)) if rest_shape else 1

    # Tiny per-layer coefficients, hoisted out of the kernel (SMEM input).
    gamma_f32 = jnp.asarray(gamma, jnp.float32).reshape(-1)[0]
    coeff = (gamma_f32 * jax.nn.softmax(scalar_parameters.astype(jnp.float32))
             ).astype(jnp.float32)

    # ---- Layout: (L, R, W) with W as the lane dim. No copies in common cases. ----
    pad = 0
    if total % 128 == 0:
        # Lane-dense fast path: largest convenient 128-multiple dividing total.
        W = next(c for c in (1024, 768, 512, 384, 256, 128) if total % c == 0)
    else:
        # Keep the native trailing dim as the (full-extent) lane dim: legal for
        # any size, masked stores, but no pad / extra HBM traffic.
        W = rest_shape[-1] if rest_shape else total
        if 2 * (L + 1) * 8 * W * itemsize > vmem_budget_bytes:
            # Pathological huge unaligned trailing dim: tail-pad the flat view.
            W = 512
            pad = (-total) % W
    R = (total + pad) // W

    x = input_tensor.reshape(L, total)
    if pad:
        x = jnp.pad(x, ((0, 0), (0, pad)))  # rare fallback only
    x = x.reshape(L, R, W)

    # ---- tile_rows: VMEM cap (incl. f32 temporaries) and >=4-step grid cap. ----
    padded_w = -(-W // 128) * 128
    temp_bytes = 3 * min(row_chunk, max(R, 1)) * padded_w * 4    # f32 acc + upcasts
    bytes_per_row = 2 * (L + 1) * padded_w * itemsize            # double-buffered in+out
    avail = max(vmem_budget_bytes - temp_bytes, 1 << 20)
    vmem_cap = max(8, (avail // bytes_per_row) // 8 * 8)
    if R <= 8:
        tile_rows = R                       # full-extent block (layout-legal)
    else:
        step_cap = max(8, (R // 4) // 8 * 8)  # >=4 grid steps: megacore + DMA overlap
        tile_rows = max(8, min(vmem_cap, step_cap))
        if tile_rows > row_chunk:
            tile_rows = max(row_chunk, tile_rows // row_chunk * row_chunk)
    num_steps = -(-R // tile_rows)          # ragged last block handled by Pallas

    footprint = bytes_per_row * (-(-tile_rows // 8) * 8) + temp_bytes
    vmem_limit = int(min(max(footprint + (4 << 20), 8 << 20),
                         vmem_budget_bytes + (8 << 20)))

    out = pl.pallas_call(
        functools.partial(_scalar_mix_kernel, row_chunk=row_chunk),
        out_shape=jax.ShapeDtypeStruct((R, W), dtype),
        grid_spec=pltpu.PrefetchScalarGridSpec(
            num_scalar_prefetch=0,
            grid=(num_steps,),
            in_specs=[
                pl.BlockSpec(memory_space=pltpu.SMEM),                 # coeff (L,)
                pl.BlockSpec((L, tile_rows, W), lambda i: (0, i, 0)),  # stacked layers
            ],
            out_specs=pl.BlockSpec((tile_rows, W), lambda i: (i, 0)),
        ),
        compiler_params=pltpu.CompilerParams(
            dimension_semantics=("parallel",),
            vmem_limit_bytes=vmem_limit),
    )(coeff, x)

    if pad:
        out = out.reshape(-1)[:total]
    return out.reshape(rest_shape)


def _reference(scalar_parameters, gamma, x):
    normed = jax.nn.softmax(scalar_parameters.astype(jnp.float32))
    normed = normed.reshape((-1,) + (1,) * (x.ndim - 1))
    g = jnp.asarray(gamma, jnp.float32).reshape(-1)[0]
    return g * jnp.sum(x.astype(jnp.float32) * normed, axis=0)


if __name__ == "__main__":
    key = jax.random.PRNGKey(0)
    k1, k2, k3 = jax.random.split(key, 3)

    mixture_size = 4
    scalar_parameters = jnp.array([0.1, -0.2, 0.3, 0.0], dtype=jnp.float32)
    gamma = jnp.array([1.0], dtype=jnp.float32)

    # Case 1: f32, (batch=2, seq=8, hidden=32) -> lane-dense fast path, grid of 1.
    x = jax.random.normal(k1, (mixture_size, 2, 8, 32), dtype=jnp.float32)
    out = jax.block_until_ready(scalar_mix_forward(scalar_parameters, gamma, x))
    ref = _reference(scalar_parameters, gamma, x)
    assert out.shape == ref.shape == (2, 8, 32)
    assert out.dtype == x.dtype
    assert jnp.allclose(out, ref, atol=1e-5, rtol=1e-5)

    # Case 2: bf16, non-128-aligned total (3*7*40) -> native-trailing-dim path,
    # ragged last grid block (masked stores), no pad, native-dtype output.
    x2 = jax.random.normal(k2, (mixture_size, 3, 7, 40), dtype=jnp.float32)
    x2_bf16 = x2.astype(jnp.bfloat16)
    out2 = jax.block_until_ready(scalar_mix_forward(scalar_parameters, gamma, x2_bf16))
    ref2 = _reference(scalar_parameters, gamma, x2_bf16)
    assert out2.shape == ref2.shape == (3, 7, 40)
    assert out2.dtype == jnp.bfloat16
    assert jnp.allclose(out2.astype(jnp.float32), ref2, atol=3e-2, rtol=3e-2)

    # Case 3: f32, (4, 64, 256) with a small row_chunk -> exercises the
    # multi-step grid and the in-kernel fori_loop row-chunked reduction.
    x3 = jax.random.normal(k3, (mixture_size, 4, 64, 256), dtype=jnp.float32)
    out3 = jax.block_until_ready(
        scalar_mix_forward(scalar_parameters, gamma, x3, row_chunk=8))
    ref3 = _reference(scalar_parameters, gamma, x3)
    assert out3.shape == ref3.shape == (4, 64, 256)
    assert out3.dtype == x3.dtype
    assert jnp.allclose(out3, ref3, atol=1e-5, rtol=1e-5)

    print("KERNEL_OK")
</pallas_src>

<mosaic_0001>
module attributes {stable_mosaic.version = 11 : i64} {
  func.func @_scalar_mix_kernel(%arg0: i32, %arg1: memref<4xf32, #tpu.memory_space<smem>>, %arg2: memref<4x1x512xf32, #tpu.memory_space<vmem>>, %arg3: memref<1x512xf32, #tpu.memory_space<vmem>>) attributes {dimension_semantics = [#tpu.dimension_semantics<parallel>], iteration_bounds = array<i64: 1>, scalar_prefetch = 0 : i64, scratch_operands = 0 : i64, tpu.core_type = #tpu.core_type<tc>, window_params = [{transform_indices = @transform_0, window_bounds = array<i64: 4>}, {transform_indices = @transform_1, window_bounds = array<i64: 4, 1, 512>}, {transform_indices = @transform_2, window_bounds = array<i64: 1, 512>}]} {
    %c0 = arith.constant 0 : index
    %0 = memref.load %arg1[%c0] : memref<4xf32, #tpu.memory_space<smem>>
    %c0_0 = arith.constant 0 : index
    %c0_1 = arith.constant 0 : index
    %c0_2 = arith.constant 0 : index
    %1 = vector.load %arg2[%c0_0, %c0_1, %c0_2] : memref<4x1x512xf32, #tpu.memory_space<vmem>>, vector<1x1x512xf32>
    %2 = vector.shape_cast %1 : vector<1x1x512xf32> to vector<1x512xf32>
    %3 = vector.broadcast %0 : f32 to vector<1x512xf32>
    %4 = arith.mulf %3, %2 : vector<1x512xf32>
    %c1 = arith.constant 1 : index
    %5 = memref.load %arg1[%c1] : memref<4xf32, #tpu.memory_space<smem>>
    %c1_3 = arith.constant 1 : index
    %c0_4 = arith.constant 0 : index
    %c0_5 = arith.constant 0 : index
    %6 = vector.load %arg2[%c1_3, %c0_4, %c0_5] : memref<4x1x512xf32, #tpu.memory_space<vmem>>, vector<1x1x512xf32>
    %7 = vector.shape_cast %6 : vector<1x1x512xf32> to vector<1x512xf32>
    %8 = vector.broadcast %5 : f32 to vector<1x512xf32>
    %9 = arith.mulf %8, %7 : vector<1x512xf32>
    %10 = arith.addf %4, %9 : vector<1x512xf32>
    %c2 = arith.constant 2 : index
    %11 = memref.load %arg1[%c2] : memref<4xf32, #tpu.memory_space<smem>>
    %c2_6 = arith.constant 2 : index
    %c0_7 = arith.constant 0 : index
    %c0_8 = arith.constant 0 : index
    %12 = vector.load %arg2[%c2_6, %c0_7, %c0_8] : memref<4x1x512xf32, #tpu.memory_space<vmem>>, vector<1x1x512xf32>
    %13 = vector.shape_cast %12 : vector<1x1x512xf32> to vector<1x512xf32>
    %14 = vector.broadcast %11 : f32 to vector<1x512xf32>
    %15 = arith.mulf %14, %13 : vector<1x512xf32>
    %16 = arith.addf %10, %15 : vector<1x512xf32>
    %c3 = arith.constant 3 : index
    %17 = memref.load %arg1[%c3] : memref<4xf32, #tpu.memory_space<smem>>
    %c3_9 = arith.constant 3 : index
    %c0_10 = arith.constant 0 : index
    %c0_11 = arith.constant 0 : index
    %18 = vector.load %arg2[%c3_9, %c0_10, %c0_11] : memref<4x1x512xf32, #tpu.memory_space<vmem>>, vector<1x1x512xf32>
    %19 = vector.shape_cast %18 : vector<1x1x512xf32> to vector<1x512xf32>
    %20 = vector.broadcast %17 : f32 to vector<1x512xf32>
    %21 = arith.mulf %20, %19 : vector<1x512xf32>
    %22 = arith.addf %16, %21 : vector<1x512xf32>
    %c0_12 = arith.constant 0 : index
    %c0_13 = arith.constant 0 : index
    %23 = vector.load %arg3[%c0_12, %c0_13] : memref<1x512xf32, #tpu.memory_space<vmem>>, vector<1x512xf32>
    tpu.vector_store %arg3[%c0_12, %c0_13], %22 {strides = array<i32>} : memref<1x512xf32, #tpu.memory_space<vmem>>, vector<1x512xf32>,
    return
  }
  func.func @transform_0(%arg0: i32) -> i32 {
    %c0_i32 = arith.constant 0 : i32
    %c0_i32_0 = arith.constant 0 : i32
    return %c0_i32 : i32
  }
  func.func @transform_1(%arg0: i32) -> (i32, i32, i32) {
    %c0_i32 = arith.constant 0 : i32
    %c0_i32_0 = arith.constant 0 : i32
    %c0_i32_1 = arith.constant 0 : i32
    return %c0_i32, %arg0, %c0_i32_0 : i32, i32, i32
  }
  func.func @transform_2(%arg0: i32) -> (i32, i32) {
    %c0_i32 = arith.constant 0 : i32
    %c0_i32_0 = arith.constant 0 : i32
    return %arg0, %c0_i32 : i32, i32
  }
}

</mosaic_0001>

<llo_original>
// kernel: tpu_custom_call.1
$region0: #{tpu_custom_call.1}
  #allocation0 [shape = 'u32[]', space=smem, size = 0x4, offset = 0x4, fixed_abs, tag = 'smem constant byte address 0x4 - core index']
  #allocation1 [shape = 'u32[72,128]{1,0:T(1,128)}', space=vmem, size = 0x9000, scoped, tag = 'internal scratch']
  %s0 = inlined_call_operand.hbm [shape: f32[4], index: 0, kind: input, shape index: {}]
  %s1 = inlined_call_operand.hbm [shape: f32[4,1,512], index: 1, kind: input, shape index: {}]
  %s2 = inlined_call_operand.hbm [shape: f32[1,512], index: 2, kind: output, shape index: {}]
  %s3 = sld [smem:[#allocation0]]
  $region26: #{tpu_custom_call.1} parent=0
    _
  %s5 = ssub.s32 1, %s3
  %s6 = scalar_select 0, %s5, %s3
  $region1: #{tpu_custom_call.1} parent=0
    #allocation2 [shape = 'u8[512]{0}', space=smem, size = 0x200, scoped, tag = 'input window, operand 0, single buffered']
    #allocation3 [shape = 's32[1]{0}', space=sflag, size = 0x4, scoped, tag = 'scoped memory for tpu_custom_call.1']
    #allocation4 [shape = 's32[1]{0}', space=sflag, size = 0x4, scoped, tag = 'scoped memory for tpu_custom_call.1']
    #allocation5 [shape = 's32[1]{0}', space=sflag, size = 0x4, scoped, tag = 'scoped memory for tpu_custom_call.1']
    #allocation6 [shape = 'u8[8192]{0}', space=vmem, size = 0x2000, scoped, tag = 'input window, operand 1, single buffered']
    #allocation7 [shape = 'u8[2048]{0}', space=vmem, size = 0x800, scoped, tag = 'output window, operand 0, single buffered']
    %7 = vsyncpa [#allocation5], 0
    %8 = vsyncpa [#allocation3], 0
    %9 = vsyncpa [#allocation4], 0
    // Predicated region
    $region2: #{tpu_custom_call.1} parent=1 // pred_check
      _
    $region3: #{tpu_custom_call.1} parent=1 // pred_check_branch
      %11 = sbr.rel (0) target = $region5
    $region4: #{tpu_custom_call.1} parent=1 // pred_region
      %13 = vsyncadd [#allocation5], 0
      %s15 = sshll.u32 %s0, 4
      %s16 = int_to_ptr.hbm [resolvable:$true] %s15
      %18 = dma.hbm_to_smem %s16, 16, [#allocation2], [#allocation5]
    $region5: #{tpu_custom_call.1} parent=1 // pred_fallthru
      _
    // Predicated region
    $region6: #{tpu_custom_call.1} parent=1 // pred_check
      _
    $region7: #{tpu_custom_call.1} parent=1 // pred_check_branch
      %20 = sbr.rel (0) target = $region9
    $region8: #{tpu_custom_call.1} parent=1 // pred_region
      %22 = vsyncadd [#allocation3], 0
      %s23 = sshll.u32 %s1, 4
      %s24 = int_to_ptr.hbm [resolvable:$true] %s23
      %s25 = sshll.u32 [#allocation6], 4
      %s26 = int_to_ptr.vmem [resolvable:$true] %s25
      %31 = dma.hbm_to_vmem [thread:$0]  %s24, 256, %s26, [#allocation3], 64, 64, 4
    $region9: #{tpu_custom_call.1} parent=1 // pred_fallthru
      _
    // Predicated region
    $region10: #{tpu_custom_call.1} parent=1 // pred_check
      _
    $region11: #{tpu_custom_call.1} parent=1 // pred_check_branch
      %33 = sbr.rel (0) target = $region13
    $region12: #{tpu_custom_call.1} parent=1 // pred_region
      %35 = dma.done [#allocation5], 16
    $region13: #{tpu_custom_call.1} parent=1 // pred_fallthru
      _
    // Predicated region
    $region14: #{tpu_custom_call.1} parent=1 // pred_check
      _
    $region15: #{tpu_custom_call.1} parent=1 // pred_check_branch
      %37 = sbr.rel (0) target = $region17
    $region16: #{tpu_custom_call.1} parent=1 // pred_region
      %39 = dma.done [#allocation3], 256
    $region17: #{tpu_custom_call.1} parent=1 // pred_fallthru
      _
    %40 = sfence
    %s41 = sld [smem:[#allocation2]]
    %v42 = vld [vmem:[#allocation6] sm:$0xf]
    %v43 = vstv %s41
    %v44 = vmul.f32 %v43, %v42
    %s45 = sld [smem:[#allocation2 + $0x1]]
    %s46 = scalar_lea.vmem [#allocation6], 4
    %v47 = vld [vmem:[%s46] sm:$0xf]
    %v48 = vstv %s45
    %v49 = vmul.f32 %v48, %v47
    %v50 = vadd.f32 %v44, %v49
    %s51 = sld [smem:[#allocation2 + $0x2]]
    %s52 = scalar_lea.vmem [#allocation6], 8
    %v53 = vld [vmem:[%s52] sm:$0xf]
    %v54 = vstv %s51
    %v55 = vmul.f32 %v54, %v53
    %v56 = vadd.f32 %v50, %v55
    %s57 = sld [smem:[#allocation2 + $0x3]]
    %s58 = scalar_lea.vmem [#allocation6], 12
    %v59 = vld [vmem:[%s58] sm:$0xf]
    %v60 = vstv %s57
    %v61 = vmul.f32 %v60, %v59
    %v62 = vadd.f32 %v56, %v61
    %v63 = vlaneseq
    %vm64 = vcmp.ge.s32.totalorder %v63, 0
    %vm65 = vcmp.lt.s32.totalorder %v63, 512
    %vm66 = vmand %vm64, %vm65
    %67 = vst.msk [vmem:[#allocation7] sm:$0xf] %vm66, %v62
    // Predicated region
    $region18: #{tpu_custom_call.1} parent=1 // pred_check
      _
    $region19: #{tpu_custom_call.1} parent=1 // pred_check_branch
      %69 = sbr.rel (0) target = $region21
    $region20: #{tpu_custom_call.1} parent=1 // pred_region
      %71 = vsyncadd [#allocation4], 0
      %s73 = sshll.u32 [#allocation7], 4
      %s74 = int_to_ptr.vmem [resolvable:$true] %s73
      %s75 = sshll.u32 %s2, 4
      %s76 = int_to_ptr.hbm [resolvable:$true] %s75
      %78 = dma.vmem_to_hbm [thread:$0]  %s74, 64, %s76, [#allocation4]
    $region21: #{tpu_custom_call.1} parent=1 // pred_fallthru
      _
    // Predicated region
    $region22: #{tpu_custom_call.1} parent=1 // pred_check
      _
    $region23: #{tpu_custom_call.1} parent=1 // pred_check_branch
      %80 = sbr.rel (0) target = $region25
    $region24: #{tpu_custom_call.1} parent=1 // pred_region
      %82 = dma.done [#allocation4], 64
    $region25: #{tpu_custom_call.1} parent=1 // pred_fallthru
      _
    %83 = vsyncpa [#allocation3], 1
    %84 = vsyncpa [#allocation4], 1
    %85 = vsyncpa [#allocation5], 1

</llo_original>
